<compile_context>
chip_gen: v7x
topology: tpu7x:2x2x1
jax: 0.10.0
libtpu: 0.0.40
codegen_flags: <defaults>
</compile_context>

<pallas_src>
import jax
import jax.numpy as jnp
from jax.experimental import pallas as pl
from jax.experimental.pallas import tpu as pltpu


def _round_up(x, m):
    return ((x + m - 1) // m) * m


def _cdiv(a, b):
    return (a + b - 1) // b


_VMEM_BUDGET = 40 * 1024 * 1024  # fits comfortably on v7x (64 MiB) and v5e/v6e


def _vmem_bytes(tm, tk, k_pad, h_pad, c_pad, resident, nk):
    """Conservative VMEM estimate (double-buffer everything pipelined)."""
    w1_elems = (k_pad if resident else tk) * h_pad
    total = (2 * tm * tk              # x, double-buffered
             + 2 * w1_elems           # w1 (resident block or streamed tile)
             + 2 * h_pad              # bn bias
             + 2 * h_pad * c_pad      # w2
             + 2 * c_pad              # b2
             + 2 * tm * c_pad         # out
             + (tm * h_pad if nk > 1 else 0))   # acc scratch
    return 4 * total


def _make_kernel(nk, tk, w1_resident):
    """Build the fused kernel for the (static) tiling configuration."""
    if nk == 1:
        # No K reduction loop: feed the dot straight into the epilogue,
        # no scratch accumulator round-trip.
        def kernel(x_ref, w1_ref, bn_bias_ref, w2_ref, b2_ref, out_ref):
            h = jnp.dot(x_ref[...], w1_ref[...],
                        preferred_element_type=jnp.float32)
            h = jnp.maximum(h + bn_bias_ref[...], 0.0)
            logits = jnp.dot(h, w2_ref[...],
                             preferred_element_type=jnp.float32)
            out_ref[...] = (logits + b2_ref[...]).astype(out_ref.dtype)
        return kernel

    def kernel(x_ref, w1_ref, bn_bias_ref, w2_ref, b2_ref, out_ref, acc_ref):
        # Grid: (batch tiles, k tiles); k = reduction over n_input, innermost.
        k = pl.program_id(1)

        if w1_resident:
            # w1 lives fully in VMEM; slice the K chunk in-kernel.
            off = pl.multiple_of(k * tk, 128)
            w1_blk = w1_ref[pl.ds(off, tk), :]
        else:
            w1_blk = w1_ref[...]

        part = jnp.dot(x_ref[...], w1_blk, preferred_element_type=jnp.float32)

        @pl.when(k == 0)
        def _():
            acc_ref[...] = part          # direct write: no zero-init store

        @pl.when(k > 0)
        def _():
            acc_ref[...] += part

        @pl.when(k == nk - 1)
        def _():
            # BN bias + ReLU (VPU), second linear + bias (MXU + VPU), store.
            h = jnp.maximum(acc_ref[...] + bn_bias_ref[...], 0.0)
            logits = jnp.dot(h, w2_ref[...],
                             preferred_element_type=jnp.float32)
            out_ref[...] = (logits + b2_ref[...]).astype(out_ref.dtype)

    return kernel


def ssl_evaluator_forward(x_nchw, params, eps=1e-5, tm=1024, tk=512):
    """x_nchw: (B, C, H, W) float32. Returns logits (B, n_classes)."""
    B = x_nchw.shape[0]
    x2d = x_nchw.reshape(B, -1).astype(jnp.float32)        # Flatten: view(B, -1)

    w1 = params["w1"]              # (n_hidden, n_input)  (PyTorch layout)
    gamma = params["gamma"]
    beta = params["beta"]
    mean = params["running_mean"]
    var = params["running_var"]
    w2 = params["w2"]              # (n_classes, n_hidden)
    b2 = params["b2"]              # (n_classes,)

    n_hidden, n_input = w1.shape
    n_classes = w2.shape[0]
    assert x2d.shape[1] == n_input

    # Fold eval-mode BN: scale into w1, keep only the bias add in-kernel.
    inv_std = 1.0 / jnp.sqrt(var + eps)
    bn_scale = gamma * inv_std                       # (n_hidden,)
    bn_bias = beta - mean * bn_scale                 # (n_hidden,)
    w1_scaled = w1.T * bn_scale[None, :]             # (n_input, n_hidden)
    w2_t = w2.T                                      # (n_hidden, n_classes)

    # ---- padded feature dims (all pads are zeros -> exact after slicing).
    K_pad = _round_up(n_input, 128)
    H_pad = _round_up(n_hidden, 128)
    if H_pad > 128:
        H_pad = _round_up(H_pad, 256)   # fill the 256-wide MXU on v6e/v7x
    C_pad = _round_up(n_classes, 128)   # lane-dense output store

    # ---- K tile: largest 128-multiple <= tk that divides K_pad (no dead K).
    TK = 128
    t = min(_round_up(tk, 128), K_pad)
    while t >= 128:
        if K_pad % t == 0:
            TK = t
            break
        t -= 128
    nk = K_pad // TK

    # w1 fully VMEM-resident when it fits: read from HBM exactly once.
    w1_resident = (8 * K_pad * H_pad) <= (_VMEM_BUDGET // 2)

    # ---- batch tile: bounded last-tile waste; nb >= 2 when possible so the
    #      "parallel" axis splits across v7x's two TensorCores.
    B8 = _round_up(B, 8)
    nb_target = max(1, _cdiv(B8, tm))
    if nb_target == 1 and B8 >= 16:
        nb_target = 2
    TM = _round_up(_cdiv(B8, nb_target), 8)

    # ---- fit the VMEM budget: shrink TM, then drop residency, then shrink TK.
    while (_vmem_bytes(TM, TK, K_pad, H_pad, C_pad, w1_resident, nk)
           > _VMEM_BUDGET and TM > 8):
        TM = max(8, _round_up(TM // 2, 8))
    if _vmem_bytes(TM, TK, K_pad, H_pad, C_pad, w1_resident, nk) > _VMEM_BUDGET:
        w1_resident = False
    while (_vmem_bytes(TM, TK, K_pad, H_pad, C_pad, w1_resident, nk)
           > _VMEM_BUDGET and TK > 128):
        half = TK // 2
        TK = half if (half % 128 == 0 and K_pad % half == 0) else 128
        nk = K_pad // TK

    B_pad = _round_up(B8, TM)
    nb = B_pad // TM

    # ---- pad only when needed (no extra HBM pass on already-aligned inputs).
    def _pad2(a, rows, cols):
        pr, pc = rows - a.shape[0], cols - a.shape[1]
        if pr == 0 and pc == 0:
            return a
        return jnp.pad(a, ((0, pr), (0, pc)))

    # Padded hidden lanes get scale=0, bias=0 -> relu(0)=0 and zero w2 rows;
    # padded K rows/cols are zero; padded batch/class entries are sliced off.
    x_p = _pad2(x2d, B_pad, K_pad)
    w1_p = _pad2(w1_scaled, K_pad, H_pad)
    bn_bias_p = _pad2(bn_bias.reshape(1, n_hidden), 1, H_pad)
    w2_p = _pad2(w2_t, H_pad, C_pad)
    b2_p = _pad2(b2.reshape(1, n_classes), 1, C_pad)

    kernel = _make_kernel(nk, TK, w1_resident)

    if nk == 1 or w1_resident:
        # Full-extent block, constant index_map -> fetched once, stays in VMEM.
        w1_spec = pl.BlockSpec((K_pad, H_pad), lambda i, k: (0, 0))
    else:
        w1_spec = pl.BlockSpec((TK, H_pad), lambda i, k: (k, 0))

    scratch = [] if nk == 1 else [pltpu.VMEM((TM, H_pad), jnp.float32)]

    flops = 2 * B_pad * K_pad * H_pad + 2 * B_pad * H_pad * C_pad
    w1_reads = 1 if (w1_resident or nk == 1 or nb == 1) else nb
    bytes_accessed = 4 * (B_pad * K_pad + w1_reads * K_pad * H_pad + H_pad
                          + H_pad * C_pad + C_pad + B_pad * C_pad)

    vmem_need = _vmem_bytes(TM, TK, K_pad, H_pad, C_pad, w1_resident, nk)
    vmem_limit = int(min(vmem_need + (8 << 20), 48 << 20))

    out = pl.pallas_call(
        kernel,
        out_shape=jax.ShapeDtypeStruct((B_pad, C_pad), jnp.float32),
        grid_spec=pltpu.PrefetchScalarGridSpec(
            num_scalar_prefetch=0,
            grid=(nb, nk),
            in_specs=[
                pl.BlockSpec((TM, TK), lambda i, k: (i, k)),        # x streams
                w1_spec,                                            # resident / streamed
                pl.BlockSpec((1, H_pad), lambda i, k: (0, 0)),      # resident
                pl.BlockSpec((H_pad, C_pad), lambda i, k: (0, 0)),  # resident
                pl.BlockSpec((1, C_pad), lambda i, k: (0, 0)),      # resident
            ],
            out_specs=pl.BlockSpec((TM, C_pad), lambda i, k: (i, 0)),
            scratch_shapes=scratch,
        ),
        compiler_params=pltpu.CompilerParams(
            dimension_semantics=("parallel", "arbitrary"),
            vmem_limit_bytes=vmem_limit,
        ),
        cost_estimate=pl.CostEstimate(flops=flops, transcendentals=0,
                                      bytes_accessed=bytes_accessed),
    )(x_p, w1_p, bn_bias_p, w2_p, b2_p)

    return out[:B, :n_classes]


def make_params(key, n_input, n_classes, n_hidden):
    k1, k2, k3, k4, k5, k6 = jax.random.split(key, 6)
    params = {
        "w1": jax.random.normal(k1, (n_hidden, n_input), jnp.float32) * 0.02,
        "gamma": 1.0 + 0.1 * jax.random.normal(k2, (n_hidden,), jnp.float32),
        "beta": 0.1 * jax.random.normal(k3, (n_hidden,), jnp.float32),
        "running_mean": 0.1 * jax.random.normal(k4, (n_hidden,), jnp.float32),
        "running_var": jnp.abs(1.0 + 0.1 * jax.random.normal(k5, (n_hidden,), jnp.float32)),
        "w2": jax.random.normal(k6, (n_classes, n_hidden), jnp.float32) * 0.02,
        "b2": jnp.linspace(-0.1, 0.1, n_classes, dtype=jnp.float32),
    }
    return params


def reference_forward(x_nchw, params, eps=1e-5):
    B = x_nchw.shape[0]
    x2d = x_nchw.reshape(B, -1)
    h = x2d @ params["w1"].T
    h = (h - params["running_mean"]) / jnp.sqrt(params["running_var"] + eps)
    h = h * params["gamma"] + params["beta"]
    h = jnp.maximum(h, 0.0)
    return h @ params["w2"].T + params["b2"]


if __name__ == "__main__":
    # Small shapes: batch=2, channels=4, spatial=16 -> n_input = 4*16*16 = 1024
    B, C, H, W = 2, 4, 16, 16
    n_input = C * H * W
    n_hidden = 32
    n_classes = 10

    key = jax.random.PRNGKey(0)
    kx, kp = jax.random.split(key)
    x = jax.random.normal(kx, (B, C, H, W), jnp.float32)
    params = make_params(kp, n_input, n_classes, n_hidden)

    logits = ssl_evaluator_forward(x, params)
    logits = jax.block_until_ready(logits)

    ref = reference_forward(x, params)
    assert logits.shape == (B, n_classes)
    assert jnp.allclose(logits, ref, atol=1e-4, rtol=1e-4)

    # TODO(synk): training-mode Dropout / batch-stat BatchNorm not implemented
    # (eval-mode forward semantics only).
    print("KERNEL_OK")
</pallas_src>

<mosaic_0001>
module attributes {stable_mosaic.version = 11 : i64} {
  func.func @kernel(%arg0: i32, %arg1: i32, %arg2: memref<8x512xf32, #tpu.memory_space<vmem>>, %arg3: memref<1024x128xf32, #tpu.memory_space<vmem>>, %arg4: memref<1x128xf32, #tpu.memory_space<vmem>>, %arg5: memref<128x128xf32, #tpu.memory_space<vmem>>, %arg6: memref<1x128xf32, #tpu.memory_space<vmem>>, %arg7: memref<8x128xf32, #tpu.memory_space<vmem>>, %arg8: memref<8x128xf32, #tpu.memory_space<vmem>>) attributes {dimension_semantics = [#tpu.dimension_semantics<parallel>, #tpu.dimension_semantics<arbitrary>], iteration_bounds = array<i64: 1, 2>, scalar_prefetch = 0 : i64, scratch_operands = 1 : i64, tpu.core_type = #tpu.core_type<tc>, window_params = [{transform_indices = @transform_0, window_bounds = array<i64: 8, 512>}, {pipeline_mode = #tpu.pipeline_mode<synchronous>, transform_indices = @transform_1, window_bounds = array<i64: 1024, 128>}, {pipeline_mode = #tpu.pipeline_mode<synchronous>, transform_indices = @transform_2, window_bounds = array<i64: 1, 128>}, {pipeline_mode = #tpu.pipeline_mode<synchronous>, transform_indices = @transform_3, window_bounds = array<i64: 128, 128>}, {pipeline_mode = #tpu.pipeline_mode<synchronous>, transform_indices = @transform_4, window_bounds = array<i64: 1, 128>}, {transform_indices = @transform_5, window_bounds = array<i64: 8, 128>}]} {
    %c512_i32 = arith.constant 512 : i32
    %0 = arith.muli %arg1, %c512_i32 : i32
    %1 = tpu.assume_multiple %0, 128 : i32
    %2 = arith.index_cast %1 : i32 to index
    %c0 = arith.constant 0 : index
    %3 = vector.load %arg3[%2, %c0] : memref<1024x128xf32, #tpu.memory_space<vmem>>, vector<512x128xf32>
    %c0_0 = arith.constant 0 : index
    %c0_1 = arith.constant 0 : index
    %4 = vector.load %arg2[%c0_0, %c0_1] : memref<8x512xf32, #tpu.memory_space<vmem>>, vector<8x512xf32>
    %cst = arith.constant dense<0.000000e+00> : vector<8x128xf32>
    %5 = tpu.matmul %4, %3, %cst {dimension_numbers = #tpu.dot_dimension_numbers<[1], [0], [0], [1], [0, 0, 1, 1], [], []>} : vector<8x512xf32>, vector<512x128xf32>, vector<8x128xf32> -> vector<8x128xf32>
    %c0_i32 = arith.constant 0 : i32
    %6 = arith.cmpi eq, %arg1, %c0_i32 : i32
    %7 = arith.extui %6 : i1 to i32
    %c0_i32_2 = arith.constant 0 : i32
    %8 = arith.cmpi ne, %7, %c0_i32_2 : i32
    scf.if %8 {
      %c0_6 = arith.constant 0 : index
      %c0_7 = arith.constant 0 : index
      %15 = vector.load %arg8[%c0_6, %c0_7] : memref<8x128xf32, #tpu.memory_space<vmem>>, vector<8x128xf32>
      tpu.vector_store %arg8[%c0_6, %c0_7], %5 {strides = array<i32>} : memref<8x128xf32, #tpu.memory_space<vmem>>, vector<8x128xf32>,
    } else {
    }
    %c0_i32_3 = arith.constant 0 : i32
    %9 = arith.cmpi sgt, %arg1, %c0_i32_3 : i32
    %10 = arith.extui %9 : i1 to i32
    %c0_i32_4 = arith.constant 0 : i32
    %11 = arith.cmpi ne, %10, %c0_i32_4 : i32
    scf.if %11 {
      %c0_6 = arith.constant 0 : index
      %c0_7 = arith.constant 0 : index
      %15 = vector.load %arg8[%c0_6, %c0_7] : memref<8x128xf32, #tpu.memory_space<vmem>>, vector<8x128xf32>
      %16 = arith.addf %15, %5 : vector<8x128xf32>
      %c0_8 = arith.constant 0 : index
      %c0_9 = arith.constant 0 : index
      %17 = vector.load %arg8[%c0_8, %c0_9] : memref<8x128xf32, #tpu.memory_space<vmem>>, vector<8x128xf32>
      tpu.vector_store %arg8[%c0_8, %c0_9], %16 {strides = array<i32>} : memref<8x128xf32, #tpu.memory_space<vmem>>, vector<8x128xf32>,
    } else {
    }
    %c1_i32 = arith.constant 1 : i32
    %12 = arith.cmpi eq, %arg1, %c1_i32 : i32
    %13 = arith.extui %12 : i1 to i32
    %c0_i32_5 = arith.constant 0 : i32
    %14 = arith.cmpi ne, %13, %c0_i32_5 : i32
    scf.if %14 {
      %c0_6 = arith.constant 0 : index
      %c0_7 = arith.constant 0 : index
      %15 = vector.load %arg8[%c0_6, %c0_7] : memref<8x128xf32, #tpu.memory_space<vmem>>, vector<8x128xf32>
      %c0_8 = arith.constant 0 : index
      %c0_9 = arith.constant 0 : index
      %16 = vector.load %arg4[%c0_8, %c0_9] : memref<1x128xf32, #tpu.memory_space<vmem>>, vector<1x128xf32>
      %17 = vector.broadcast %16 : vector<1x128xf32> to vector<8x128xf32>
      %18 = arith.addf %15, %17 : vector<8x128xf32>
      %cst_10 = arith.constant 0.000000e+00 : f32
      %19 = vector.broadcast %cst_10 : f32 to vector<8x128xf32>
      %20 = arith.maximumf %18, %19 : vector<8x128xf32>
      %c0_11 = arith.constant 0 : index
      %c0_12 = arith.constant 0 : index
      %21 = vector.load %arg5[%c0_11, %c0_12] : memref<128x128xf32, #tpu.memory_space<vmem>>, vector<128x128xf32>
      %cst_13 = arith.constant dense<0.000000e+00> : vector<8x128xf32>
      %22 = tpu.matmul %20, %21, %cst_13 {dimension_numbers = #tpu.dot_dimension_numbers<[1], [0], [0], [1], [0, 0, 1, 1], [], []>} : vector<8x128xf32>, vector<128x128xf32>, vector<8x128xf32> -> vector<8x128xf32>
      %c0_14 = arith.constant 0 : index
      %c0_15 = arith.constant 0 : index
      %23 = vector.load %arg6[%c0_14, %c0_15] : memref<1x128xf32, #tpu.memory_space<vmem>>, vector<1x128xf32>
      %24 = vector.broadcast %23 : vector<1x128xf32> to vector<8x128xf32>
      %25 = arith.addf %22, %24 : vector<8x128xf32>
      %c0_16 = arith.constant 0 : index
      %c0_17 = arith.constant 0 : index
      %26 = vector.load %arg7[%c0_16, %c0_17] : memref<8x128xf32, #tpu.memory_space<vmem>>, vector<8x128xf32>
      tpu.vector_store %arg7[%c0_16, %c0_17], %25 {strides = array<i32>} : memref<8x128xf32, #tpu.memory_space<vmem>>, vector<8x128xf32>,
    } else {
    }
    return
  }
  func.func @transform_0(%arg0: i32, %arg1: i32) -> (i32, i32) {
    %c0_i32 = arith.constant 0 : i32
    return %arg0, %arg1 : i32, i32
  }
  func.func @transform_1(%arg0: i32, %arg1: i32) -> (i32, i32) {
    %c0_i32 = arith.constant 0 : i32
    %c0_i32_0 = arith.constant 0 : i32
    %c0_i32_1 = arith.constant 0 : i32
    return %c0_i32, %c0_i32_0 : i32, i32
  }
  func.func @transform_2(%arg0: i32, %arg1: i32) -> (i32, i32) {
    %c0_i32 = arith.constant 0 : i32
    %c0_i32_0 = arith.constant 0 : i32
    %c0_i32_1 = arith.constant 0 : i32
    return %c0_i32, %c0_i32_0 : i32, i32
  }
  func.func @transform_3(%arg0: i32, %arg1: i32) -> (i32, i32) {
    %c0_i32 = arith.constant 0 : i32
    %c0_i32_0 = arith.constant 0 : i32
    %c0_i32_1 = arith.constant 0 : i32
    return %c0_i32, %c0_i32_0 : i32, i32
  }
  func.func @transform_4(%arg0: i32, %arg1: i32) -> (i32, i32) {
    %c0_i32 = arith.constant 0 : i32
    %c0_i32_0 = arith.constant 0 : i32
    %c0_i32_1 = arith.constant 0 : i32
    return %c0_i32, %c0_i32_0 : i32, i32
  }
  func.func @transform_5(%arg0: i32, %arg1: i32) -> (i32, i32) {
    %c0_i32 = arith.constant 0 : i32
    %c0_i32_0 = arith.constant 0 : i32
    return %arg0, %c0_i32 : i32, i32
  }
}

</mosaic_0001>

<llo_original>
// kernel: tpu_custom_call.1
$region0: #{tpu_custom_call.1}
  #allocation0 [shape = 'u32[]', space=smem, size = 0x4, offset = 0x4, fixed_abs, tag = 'smem constant byte address 0x4 - core index']
  #allocation1 [shape = 'u32[144,128]{1,0:T(1,128)}', space=vmem, size = 0x12000, scoped, tag = 'internal scratch']
  #allocation2 [shape = 'f32[8,128]{1,0:T(8,128)}', space=vmem, size = 0x1000, scoped, tag = 'scratch operand']
  %s0 = inlined_call_operand.hbm [shape: f32[8,1024], index: 0, kind: input, shape index: {}]
  %s1 = inlined_call_operand.hbm [shape: f32[1024,128], index: 1, kind: input, shape index: {}]
  %s2 = inlined_call_operand.vmem [shape: f32[1,128], index: 2, kind: input, shape index: {}]
  %s3 = inlined_call_operand.hbm [shape: f32[128,128], index: 3, kind: input, shape index: {}]
  %s4 = inlined_call_operand.vmem [shape: f32[1,128], index: 4, kind: input, shape index: {}]
  %s5 = inlined_call_operand.hbm [shape: f32[8,128], index: 5, kind: output, shape index: {}]
  %s6 = sld [smem:[#allocation0]]
  $region77: #{tpu_custom_call.1} parent=0
    _
  %s8 = ssub.s32 1, %s6
  %s9 = scalar_select 0, %s8, %s6
  $region1: #{tpu_custom_call.1} parent=0
    #allocation3 [shape = 'u8[32768]{0}', space=vmem, size = 0x8000, scoped, tag = 'input window, operand 0']
    #allocation4 [shape = 's32[2]{0}', space=sflag, size = 0x8, scoped, tag = 'scoped memory for tpu_custom_call.1']
    #allocation5 [shape = 's32[2]{0}', space=sflag, size = 0x8, scoped, tag = 'scoped memory for tpu_custom_call.1']
    #allocation6 [shape = 'u8[524288]{0}', space=vmem, size = 0x80000, scoped, tag = 'input window, operand 1, single buffered']
    #allocation7 [shape = 's32[1]{0}', space=sflag, size = 0x4, scoped, tag = 'scoped memory for tpu_custom_call.1']
    #allocation8 [shape = 'u8[65536]{0}', space=vmem, size = 0x10000, scoped, tag = 'input window, operand 3, single buffered']
    #allocation9 [shape = 'u8[4096]{0}', space=vmem, size = 0x1000, scoped, tag = 'output window, operand 0, single buffered']
    %10 = vsyncpa [#allocation4], 0
    %s11 = scalar_lea.sflag [#allocation4], 1
    %12 = vsyncpa %s11, 0
    %13 = vsyncpa [#allocation7], 0
    %14 = vsyncpa [#allocation5], 0
    loop: start=0, step=1, limit=4
    $region2: #{tpu_custom_call.1} parent=1 // loop_pre_header
      _
    $region3: #{tpu_custom_call.1} parent=1 // loop_header
      %s16 = sphi 0, %s20
      %p17 = scmp.ge.s32.totalorder %s16, 4
      %s23 = sphi 0, %s35
      %s24 = sphi 0, %s31
      %s25 = sphi 0, %s23
      %s26 = sphi 0, %s24
      %s27 = sphi 0, %s25
      %s28 = sphi 0, %s26
      %s40 = sphi 0, %s42
      %s43 = sphi 0, %s40
      %s44 = sphi 0, %s43
      %s60 = sphi 0, %s44
      %s64 = sphi 0, %s64
      %s66 = sphi 0, %s64
      %s67 = sphi 0, %s66
      %s81 = sphi 0, %s67
      %s85 = sphi 0, %s85
      %s87 = sphi 0, %s85
      %s88 = sphi 0, %s87
      %s102 = sphi 0, %s88
      %s106 = sphi 0, %s106
      %s108 = sphi 0, %s106
      %s109 = sphi 0, %s108
      %s123 = sphi 0, %s109
      %s127 = sphi 0, %s127
      %s129 = sphi 0, %s127
      %s130 = sphi 0, %s129
      %s144 = sphi 0, %s130
      %s150 = sphi 0, %s152
      %s153 = sphi 0, %s150
      %s154 = sphi 0, %s153
      %s170 = sphi 0, %s154
    $region4: #{tpu_custom_call.1} parent=1 // loop_header_branch
      %19 = sbr.rel (%p17) target = $region8
    $region5: #{tpu_custom_call.1} parent=1 // loop_body
      %s21 = ssub.s32 %s16, 1
      %s22 = ssub.s32 %s16, 2
      %s29 = sadd.s32 1, %s24
      %p30 = scmp.ge.s32.totalorder %s29, 2
      %s31 = scalar_select %p30, 0, %s29
      %s32 = sadd.s32 1, %s23
      %s33 = scalar_select %p30, %s32, %s23
      %p34 = scmp.ge.s32.totalorder %s33, 1
      %s35 = scalar_select %p34, 0, %s33
      %s36 = ssub.s32 %s23, %s35
      %s37 = ssub.s32 %s24, %s31
      %s38 = sor.u32 %s36, %s37
      %p39 = scmp.eq.s32.totalorder %s38, 0
      %s41 = sadd.s32 %s40, 1
      %s42 = scalar_select %p39, %s40, %s41
      %p45 = pneg %p39
      %p46 = scmp.eq.s32.totalorder %s16, 1
      %p47 = por %p45, %p46
      %p48 = scmp.ne.s32.totalorder %s40, %s43
      %p49 = scmp.eq.s32.totalorder %s16, 0
      %p50 = por %p48, %p49
      %p51 = scmp.ne.s32.totalorder %s40, %s43
      %p52 = scmp.eq.s32.totalorder %s21, 1
      %p53 = por %p51, %p52
      %p54 = scmp.ne.s32.totalorder %s43, %s44
      %p55 = scmp.eq.s32.totalorder %s21, 0
      %p56 = por %p54, %p55
      %p57 = scmp.ne.s32.totalorder %s43, %s44
      %p58 = scmp.eq.s32.totalorder %s22, 1
      %p59 = por %p57, %p58
      %p61 = scmp.ne.s32.totalorder %s44, %s60
      %p62 = scmp.eq.s32.totalorder %s22, 0
      %p63 = por %p61, %p62
      %s65 = sadd.s32 %s64, 1
      %p68 = scmp.eq.s32.totalorder %s16, 1
      %p69 = scmp.ne.s32.totalorder %s64, %s66
      %p70 = scmp.eq.s32.totalorder %s16, 0
      %p71 = por %p69, %p70
      %p72 = scmp.ne.s32.totalorder %s64, %s66
      %p73 = scmp.eq.s32.totalorder %s21, 1
      %p74 = por %p72, %p73
      %p75 = scmp.ne.s32.totalorder %s66, %s67
      %p76 = scmp.eq.s32.totalorder %s21, 0
      %p77 = por %p75, %p76
      %p78 = scmp.ne.s32.totalorder %s66, %s67
      %p79 = scmp.eq.s32.totalorder %s22, 1
      %p80 = por %p78, %p79
      %p82 = scmp.ne.s32.totalorder %s67, %s81
      %p83 = scmp.eq.s32.totalorder %s22, 0
      %p84 = por %p82, %p83
      %s86 = sadd.s32 %s85, 1
      %p89 = scmp.eq.s32.totalorder %s16, 1
      %p90 = scmp.ne.s32.totalorder %s85, %s87
      %p91 = scmp.eq.s32.totalorder %s16, 0
      %p92 = por %p90, %p91
      %p93 = scmp.ne.s32.totalorder %s85, %s87
      %p94 = scmp.eq.s32.totalorder %s21, 1
      %p95 = por %p93, %p94
      %p96 = scmp.ne.s32.totalorder %s87, %s88
      %p97 = scmp.eq.s32.totalorder %s21, 0
      %p98 = por %p96, %p97
      %p99 = scmp.ne.s32.totalorder %s87, %s88
      %p100 = scmp.eq.s32.totalorder %s22, 1
      %p101 = por %p99, %p100
      %p103 = scmp.ne.s32.totalorder %s88, %s102
      %p104 = scmp.eq.s32.totalorder %s22, 0
      %p105 = por %p103, %p104
      %s107 = sadd.s32 %s106, 1
      %p110 = scmp.eq.s32.totalorder %s16, 1
      %p111 = scmp.ne.s32.totalorder %s106, %s108
      %p112 = scmp.eq.s32.totalorder %s16, 0
      %p113 = por %p111, %p112
      %p114 = scmp.ne.s32.totalorder %s106, %s108
      %p115 = scmp.eq.s32.totalorder %s21, 1
      %p116 = por %p114, %p115
      %p117 = scmp.ne.s32.totalorder %s108, %s109
      %p118 = scmp.eq.s32.totalorder %s21, 0
      %p119 = por %p117, %p118
      %p120 = scmp.ne.s32.totalorder %s108, %s109
      %p121 = scmp.eq.s32.totalorder %s22, 1
      %p122 = por %p120, %p121
      %p124 = scmp.ne.s32.totalorder %s109, %s123
      %p125 = scmp.eq.s32.totalorder %s22, 0
      %p126 = por %p124, %p125
      %s128 = sadd.s32 %s127, 1
      %p131 = scmp.eq.s32.totalorder %s16, 1
      %p132 = scmp.ne.s32.totalorder %s127, %s129
      %p133 = scmp.eq.s32.totalorder %s16, 0
      %p134 = por %p132, %p133
      %p135 = scmp.ne.s32.totalorder %s127, %s129
      %p136 = scmp.eq.s32.totalorder %s21, 1
      %p137 = por %p135, %p136
      %p138 = scmp.ne.s32.totalorder %s129, %s130
      %p139 = scmp.eq.s32.totalorder %s21, 0
      %p140 = por %p138, %p139
      %p141 = scmp.ne.s32.totalorder %s129, %s130
      %p142 = scmp.eq.s32.totalorder %s22, 1
      %p143 = por %p141, %p142
      %p145 = scmp.ne.s32.totalorder %s130, %s144
      %p146 = scmp.eq.s32.totalorder %s22, 0
      %p147 = por %p145, %p146
      %s148 = ssub.s32 %s23, %s35
      %p149 = scmp.eq.s32.totalorder %s148, 0
      %s151 = sadd.s32 %s150, 1
      %s152 = scalar_select %p149, %s150, %s151
      %p155 = pneg %p149
      %p156 = scmp.eq.s32.totalorder %s16, 1
      %p157 = por %p155, %p156
      %p158 = scmp.ne.s32.totalorder %s150, %s153
      %p159 = scmp.eq.s32.totalorder %s16, 0
      %p160 = por %p158, %p159
      %p161 = scmp.ne.s32.totalorder %s150, %s153
      %p162 = scmp.eq.s32.totalorder %s21, 1
      %p163 = por %p161, %p162
      %p164 = scmp.ne.s32.totalorder %s153, %s154
      %p165 = scmp.eq.s32.totalorder %s21, 0
      %p166 = por %p164, %p165
      %p167 = scmp.ne.s32.totalorder %s153, %s154
      %p168 = scmp.eq.s32.totalorder %s22, 1
      %p169 = por %p167, %p168
      %p171 = scmp.ne.s32.totalorder %s154, %s170
      %p172 = scmp.eq.s32.totalorder %s22, 0
      %p173 = por %p171, %p172
      %p174 = scmp.le.s32.totalorder 1, %s16
      %p175 = scmp.lt.s32.totalorder %s16, 3
      %p176 = pnand %p174, %p175
      %p177 = pneg %p176
      // Predicated region
      $region9: #{tpu_custom_call.1} parent=5 // pred_check
        _
      $region10: #{tpu_custom_call.1} parent=5 // pred_check_branch
        %179 = sbr.rel (%p176) target = $region12
      $region11: #{tpu_custom_call.1} parent=5 // pred_region
        %s180 = ssub.s32 %s16, 1
        // Predicated region
        $region13: #{tpu_custom_call.1} parent=11 // pred_check
          %p181 = pneg %p77
        $region14: #{tpu_custom_call.1} parent=11 // pred_check_branch
          %183 = sbr.rel (%p181) target = $region16
        $region15: #{tpu_custom_call.1} parent=11 // pred_region
          %s185 = ssub.s32 16384, 16384
          %186 = vsyncadd [#allocation7], %s185
          %s187 = sshll.u32 [#allocation6], 4
          %s188 = int_to_ptr.vmem [resolvable:$true] %s187
          %193 = dma.hbm_to_vmem [thread:$0]  %s1, 16384, %s188, [#allocation7], 128, 128, 8
        $region16: #{tpu_custom_call.1} parent=11 // pred_fallthru
          _
        // Predicated region
        $region17: #{tpu_custom_call.1} parent=11 // pred_check
          %p194 = pneg %p98
        $region18: #{tpu_custom_call.1} parent=11 // pred_check_branch
          %196 = sbr.rel (%p194) target = $region20
        $region19: #{tpu_custom_call.1} parent=11 // pred_region
          _
        $region20: #{tpu_custom_call.1} parent=11 // pred_fallthru
          _
        // Predicated region
        $region21: #{tpu_custom_call.1} parent=11 // pred_check
          %p197 = pneg %p119
        $region22: #{tpu_custom_call.1} parent=11 // pred_check_branch
          %199 = sbr.rel (%p197) target = $region24
        $region23: #{tpu_custom_call.1} parent=11 // pred_region
          %s201 = ssub.s32 2048, 2048
          %202 = vsyncadd [#allocation7], %s201
          %s203 = sshll.u32 [#allocation8], 4
          %s204 = int_to_ptr.vmem [resolvable:$true] %s203
          %209 = dma.hbm_to_vmem [thread:$0]  %s3, 2048, %s204, [#allocation7], 128, 128, 8
        $region24: #{tpu_custom_call.1} parent=11 // pred_fallthru
          _
        // Predicated region
        $region25: #{tpu_custom_call.1} parent=11 // pred_check
          %p210 = pneg %p140
        $region26: #{tpu_custom_call.1} parent=11 // pred_check_branch
          %212 = sbr.rel (%p210) target = $region28
        $region27: #{tpu_custom_call.1} parent=11 // pred_region
          _
        $region28: #{tpu_custom_call.1} parent=11 // pred_fallthru
          _
      $region12: #{tpu_custom_call.1} parent=5 // pred_fallthru
        _
      %p213 = scmp.lt.s32.totalorder %s16, 2
      // Predicated region
      $region29: #{tpu_custom_call.1} parent=5 // pred_check
        %p214 = pneg %p213
      $region30: #{tpu_custom_call.1} parent=5 // pred_check_branch
        %216 = sbr.rel (%p214) target = $region32
      $region31: #{tpu_custom_call.1} parent=5 // pred_region
        // Predicated region
        $region33: #{tpu_custom_call.1} parent=31 // pred_check
          %p217 = pneg %p50
        $region34: #{tpu_custom_call.1} parent=31 // pred_check_branch
          %219 = sbr.rel (%p217) target = $region36
        $region35: #{tpu_custom_call.1} parent=31 // pred_region
          %s220 = sand.u32 %s40, 1
          %s221 = scalar_lea.sflag [#allocation4], %s220
          %s222 = sand.u32 %s40, 1
          %s223 = smul.addr %s222, 32
          %s224 = scalar_lea.vmem [#allocation3], %s223
          %s225 = smul.u32 4, %s24
          %s227 = ssub.s32 512, 512
          %228 = vsyncadd %s221, %s227
          %s229 = smul.addr %s23, 8
          %s230 = sadd.s32 %s225, %s229
          %s231 = smul.addr %s230, 128
          %s232 = scalar_lea.hbm %s0, %s231
          %s234 = sshll.u32 %s224, 4
          %s235 = int_to_ptr.vmem [resolvable:$true] %s234
          %237 = dma.hbm_to_vmem [thread:$0]  %s232, 512, %s235, %s221
        $region36: #{tpu_custom_call.1} parent=31 // pred_fallthru
          _
      $region32: #{tpu_custom_call.1} parent=5 // pred_fallthru
        _
      %p238 = scmp.le.s32.totalorder 1, %s16
      %p239 = scmp.lt.s32.totalorder %s16, 3
      %p240 = pnand %p238, %p239
      %p241 = pneg %p240
      // Predicated region
      $region37: #{tpu_custom_call.1} parent=5 // pred_check
        _
      $region38: #{tpu_custom_call.1} parent=5 // pred_check_branch
        %243 = sbr.rel (%p240) target = $region40
      $region39: #{tpu_custom_call.1} parent=5 // pred_region
        %s244 = ssub.s32 %s16, 1
        %s245 = sand.u32 %s43, 1
        %s246 = scalar_lea.sflag [#allocation4], %s245
        %s247 = sand.u32 %s43, 1
        %s248 = smul.addr %s247, 32
        %s249 = scalar_lea.vmem [#allocation3], %s248
        // Predicated region
        $region41: #{tpu_custom_call.1} parent=39 // pred_check
          %p250 = pneg %p56
        $region42: #{tpu_custom_call.1} parent=39 // pred_check_branch
          %252 = sbr.rel (%p250) target = $region44
        $region43: #{tpu_custom_call.1} parent=39 // pred_region
          %253 = dma.done %s246, 512
        $region44: #{tpu_custom_call.1} parent=39 // pred_fallthru
          _
        // Predicated region
        $region45: #{tpu_custom_call.1} parent=39 // pred_check
          %p254 = pneg %p77
        $region46: #{tpu_custom_call.1} parent=39 // pred_check_branch
          %256 = sbr.rel (%p254) target = $region48
        $region47: #{tpu_custom_call.1} parent=39 // pred_region
          %257 = dma.done [#allocation7], 16384
        $region48: #{tpu_custom_call.1} parent=39 // pred_fallthru
          _
        // Predicated region
        $region49: #{tpu_custom_call.1} parent=39 // pred_check
          %p258 = pneg %p119
        $region50: #{tpu_custom_call.1} parent=39 // pred_check_branch
          %260 = sbr.rel (%p258) target = $region52
        $region51: #{tpu_custom_call.1} parent=39 // pred_region
          %261 = dma.done [#allocation7], 2048
        $region52: #{tpu_custom_call.1} parent=39 // pred_fallthru
          _
        %s262 = sand.u32 %s43, 1
        %s263 = scalar_lea.sflag [#allocation4], %s262
        %s264 = sand.u32 %s43, 1
        %s265 = smul.addr %s264, 32
        %s266 = scalar_lea.vmem [#allocation3], %s265
        %p267 = pneg %p56
        %p268 = pneg %p53
        %p269 = pneg %p77
        %p270 = pneg %p74
        %p271 = pneg %p98
        %p272 = pneg %p95
        %p273 = pneg %p119
        %p274 = pneg %p116
        %p275 = pneg %p140
        %p276 = pneg %p137
        %p277 = pneg %p166
        %p278 = pneg %p163
        %s279 = smul.u32 4, %s26
        %s280 = smul.u32 %s26, 512
        %s281 = scalar_lea.vmem [#allocation6], %s280
        %v282 = vld [vmem:[%s281] sm:$0xff]
        %v283 = vld [vmem:[%s281 + $0x8] sm:$0xff]
        %v284 = vld [vmem:[%s281 + $0x10] sm:$0xff]
        %v285 = vld [vmem:[%s281 + $0x18] sm:$0xff]
        %v286 = vld [vmem:[%s281 + $0x20] sm:$0xff]
        %v287 = vld [vmem:[%s281 + $0x28] sm:$0xff]
        %v288 = vld [vmem:[%s281 + $0x30] sm:$0xff]
        %v289 = vld [vmem:[%s281 + $0x38] sm:$0xff]
        %v290 = vld [vmem:[%s281 + $0x40] sm:$0xff]
        %v291 = vld [vmem:[%s281 + $0x48] sm:$0xff]
        %v292 = vld [vmem:[%s281 + $0x50] sm:$0xff]
        %v293 = vld [vmem:[%s281 + $0x58] sm:$0xff]
        %v294 = vld [vmem:[%s281 + $0x60] sm:$0xff]
        %v295 = vld [vmem:[%s281 + $0x68] sm:$0xff]
        %v296 = vld [vmem:[%s281 + $0x70] sm:$0xff]
        %v297 = vld [vmem:[%s281 + $0x78] sm:$0xff]
        %v298 = vld [vmem:[%s281 + $0x80] sm:$0xff]
        %v299 = vld [vmem:[%s281 + $0x88] sm:$0xff]
        %v300 = vld [vmem:[%s281 + $0x90] sm:$0xff]
        %v301 = vld [vmem:[%s281 + $0x98] sm:$0xff]
        %v302 = vld [vmem:[%s281 + $0xa0] sm:$0xff]
        %v303 = vld [vmem:[%s281 + $0xa8] sm:$0xff]
        %v304 = vld [vmem:[%s281 + $0xb0] sm:$0xff]
        %v305 = vld [vmem:[%s281 + $0xb8] sm:$0xff]
        %v306 = vld [vmem:[%s281 + $0xc0] sm:$0xff]
        %v307 = vld [vmem:[%s281 + $0xc8] sm:$0xff]
        %v308 = vld [vmem:[%s281 + $0xd0] sm:$0xff]
        %v309 = vld [vmem:[%s281 + $0xd8] sm:$0xff]
        %v310 = vld [vmem:[%s281 + $0xe0] sm:$0xff]
        %v311 = vld [vmem:[%s281 + $0xe8] sm:$0xff]
        %v312 = vld [vmem:[%s281 + $0xf0] sm:$0xff]
        %v313 = vld [vmem:[%s281 + $0xf8] sm:$0xff]
        %v314 = vld [vmem:[%s281 + $0x100] sm:$0xff]
        %v315 = vld [vmem:[%s281 + $0x108] sm:$0xff]
        %v316 = vld [vmem:[%s281 + $0x110] sm:$0xff]
        %v317 = vld [vmem:[%s281 + $0x118] sm:$0xff]
        %v318 = vld [vmem:[%s281 + $0x120] sm:$0xff]
        %v319 = vld [vmem:[%s281 + $0x128] sm:$0xff]
        %v320 = vld [vmem:[%s281 + $0x130] sm:$0xff]
        %v321 = vld [vmem:[%s281 + $0x138] sm:$0xff]
        %v322 = vld [vmem:[%s281 + $0x140] sm:$0xff]
        %v323 = vld [vmem:[%s281 + $0x148] sm:$0xff]
        %v324 = vld [vmem:[%s281 + $0x150] sm:$0xff]
        %v325 = vld [vmem:[%s281 + $0x158] sm:$0xff]
        %v326 = vld [vmem:[%s281 + $0x160] sm:$0xff]
        %v327 = vld [vmem:[%s281 + $0x168] sm:$0xff]
        %v328 = vld [vmem:[%s281 + $0x170] sm:$0xff]
        %v329 = vld [vmem:[%s281 + $0x178] sm:$0xff]
        %v330 = vld [vmem:[%s281 + $0x180] sm:$0xff]
        %v331 = vld [vmem:[%s281 + $0x188] sm:$0xff]
        %v332 = vld [vmem:[%s281 + $0x190] sm:$0xff]
        %v333 = vld [vmem:[%s281 + $0x198] sm:$0xff]
        %v334 = vld [vmem:[%s281 + $0x1a0] sm:$0xff]
        %v335 = vld [vmem:[%s281 + $0x1a8] sm:$0xff]
        %v336 = vld [vmem:[%s281 + $0x1b0] sm:$0xff]
        %v337 = vld [vmem:[%s281 + $0x1b8] sm:$0xff]
        %v338 = vld [vmem:[%s281 + $0x1c0] sm:$0xff]
        %v339 = vld [vmem:[%s281 + $0x1c8] sm:$0xff]
        %v340 = vld [vmem:[%s281 + $0x1d0] sm:$0xff]
        %v341 = vld [vmem:[%s281 + $0x1d8] sm:$0xff]
        %v342 = vld [vmem:[%s281 + $0x1e0] sm:$0xff]
        %v343 = vld [vmem:[%s281 + $0x1e8] sm:$0xff]
        %v344 = vld [vmem:[%s281 + $0x1f0] sm:$0xff]
        %v345 = vld [vmem:[%s281 + $0x1f8] sm:$0xff]
        %v346 = vld [vmem:[%s249] sm:$0xff]
        %v347 = vld [vmem:[%s249 + $0x8] sm:$0xff]
        %v348 = vld [vmem:[%s249 + $0x10] sm:$0xff]
        %v349 = vld [vmem:[%s249 + $0x18] sm:$0xff]
        %350 = vmatprep.subr.mxu0 0.0
        %351 = vmatpush1.msra.mxu0 %v282
        %352 = vmatprep.subr.mxu0 0.0
        %353 = vmatpush1.msra.mxu0 %v283
        %354 = vmatprep.subr.mxu0 0.0
        %355 = vmatpush1.msra.mxu0 %v284
        %356 = vmatprep.subr.mxu0 0.0
        %357 = vmatpush1.msra.mxu0 %v285
        %358 = vmatprep.subr.mxu0 0.0
        %359 = vmatpush1.msra.mxu0 %v286
        %360 = vmatprep.subr.mxu0 0.0
        %361 = vmatpush1.msra.mxu0 %v287
        %362 = vmatprep.subr.mxu0 0.0
        %363 = vmatpush1.msra.mxu0 %v288
        %364 = vmatprep.subr.mxu0 0.0
        %365 = vmatpush1.msra.mxu0 %v289
        %366 = vmatprep.subr.mxu0 0.0
        %367 = vmatpush1.msra.mxu0 %v290
        %368 = vmatprep.subr.mxu0 0.0
        %369 = vmatpush1.msra.mxu0 %v291
        %370 = vmatprep.subr.mxu0 0.0
        %371 = vmatpush1.msra.mxu0 %v292
        %372 = vmatprep.subr.mxu0 0.0
        %373 = vmatpush1.msra.mxu0 %v293
        %374 = vmatprep.subr.mxu0 0.0
        %375 = vmatpush1.msra.mxu0 %v294
        %376 = vmatprep.subr.mxu0 0.0
        %377 = vmatpush1.msra.mxu0 %v295
        %378 = vmatprep.subr.mxu0 0.0
        %379 = vmatpush1.msra.mxu0 %v296
        %380 = vmatprep.subr.mxu0 0.0
        %381 = vmatpush1.msra.mxu0 %v297
        %382 = vmatprep.subr.mxu0 0.0
        %383 = vmatpush1.msra.mxu0 %v298
        %384 = vmatprep.subr.mxu0 0.0
        %385 = vmatpush1.msra.mxu0 %v299
        %386 = vmatprep.subr.mxu0 0.0
        %387 = vmatpush1.msra.mxu0 %v300
        %388 = vmatprep.subr.mxu0 0.0
        %389 = vmatpush1.msra.mxu0 %v301
        %390 = vmatprep.subr.mxu0 0.0
        %391 = vmatpush1.msra.mxu0 %v302
        %392 = vmatprep.subr.mxu0 0.0
        %393 = vmatpush1.msra.mxu0 %v303
        %394 = vmatprep.subr.mxu0 0.0
        %395 = vmatpush1.msra.mxu0 %v304
        %396 = vmatprep.subr.mxu0 0.0
        %397 = vmatpush1.msra.mxu0 %v305
        %398 = vmatprep.subr.mxu0 0.0
        %399 = vmatpush1.msra.mxu0 %v306
        %400 = vmatprep.subr.mxu0 0.0
        %401 = vmatpush1.msra.mxu0 %v307
        %402 = vmatprep.subr.mxu0 0.0
        %403 = vmatpush1.msra.mxu0 %v308
        %404 = vmatprep.subr.mxu0 0.0
        %405 = vmatpush1.msra.mxu0 %v309
        %406 = vmatprep.subr.mxu0 0.0
        %407 = vmatpush1.msra.mxu0 %v310
        %408 = vmatprep.subr.mxu0 0.0
        %409 = vmatpush1.msra.mxu0 %v311
        %410 = vmatprep.subr.mxu0 0.0
        %411 = vmatpush1.msra.mxu0 %v312
        %412 = vmatprep.subr.mxu0 0.0
        %413 = vmatpush1.msra.mxu0 %v313
        %414 = vmatprep.mubr.f32.mxu0 %v347
        %415 = vmatmul.mubr.f32.gmra.mrb[0].mxu0 %v346
        %v416 = vpop.f32.mrb[0].mxu0
        %v417 = vadd.f32 0.0, %v416
        %v418 = vpop.f32.mrb[0].mxu0
        %419 = vdwg.mxu0
        %420 = vmatprep.subr.mxu0 0.0
        %421 = vmatpush1.msra.mxu0 %v314
        %422 = vmatprep.subr.mxu0 0.0
        %423 = vmatpush1.msra.mxu0 %v315
        %424 = vmatprep.subr.mxu0 0.0
        %425 = vmatpush1.msra.mxu0 %v316
        %426 = vmatprep.subr.mxu0 0.0
        %427 = vmatpush1.msra.mxu0 %v317
        %428 = vmatprep.subr.mxu0 0.0
        %429 = vmatpush1.msra.mxu0 %v318
        %430 = vmatprep.subr.mxu0 0.0
        %431 = vmatpush1.msra.mxu0 %v319
        %432 = vmatprep.subr.mxu0 0.0
        %433 = vmatpush1.msra.mxu0 %v320
        %434 = vmatprep.subr.mxu0 0.0
        %435 = vmatpush1.msra.mxu0 %v321
        %436 = vmatprep.subr.mxu0 0.0
        %437 = vmatpush1.msra.mxu0 %v322
        %438 = vmatprep.subr.mxu0 0.0
        %439 = vmatpush1.msra.mxu0 %v323
        %440 = vmatprep.subr.mxu0 0.0
        %441 = vmatpush1.msra.mxu0 %v324
        %442 = vmatprep.subr.mxu0 0.0
        %443 = vmatpush1.msra.mxu0 %v325
        %444 = vmatprep.subr.mxu0 0.0
        %445 = vmatpush1.msra.mxu0 %v326
        %446 = vmatprep.subr.mxu0 0.0
        %447 = vmatpush1.msra.mxu0 %v327
        %448 = vmatprep.subr.mxu0 0.0
        %449 = vmatpush1.msra.mxu0 %v328
        %450 = vmatprep.subr.mxu0 0.0
        %451 = vmatpush1.msra.mxu0 %v329
        %452 = vmatprep.subr.mxu0 0.0
        %453 = vmatpush1.msra.mxu0 %v330
        %454 = vmatprep.subr.mxu0 0.0
        %455 = vmatpush1.msra.mxu0 %v331
        %456 = vmatprep.subr.mxu0 0.0
        %457 = vmatpush1.msra.mxu0 %v332
        %458 = vmatprep.subr.mxu0 0.0
        %459 = vmatpush1.msra.mxu0 %v333
        %460 = vmatprep.subr.mxu0 0.0
        %461 = vmatpush1.msra.mxu0 %v334
        %462 = vmatprep.subr.mxu0 0.0
        %463 = vmatpush1.msra.mxu0 %v335
        %464 = vmatprep.subr.mxu0 0.0
        %465 = vmatpush1.msra.mxu0 %v336
        %466 = vmatprep.subr.mxu0 0.0
        %467 = vmatpush1.msra.mxu0 %v337
        %468 = vmatprep.subr.mxu0 0.0
        %469 = vmatpush1.msra.mxu0 %v338
        %470 = vmatprep.subr.mxu0 0.0
        %471 = vmatpush1.msra.mxu0 %v339
        %472 = vmatprep.subr.mxu0 0.0
        %473 = vmatpush1.msra.mxu0 %v340
        %474 = vmatprep.subr.mxu0 0.0
        %475 = vmatpush1.msra.mxu0 %v341
        %476 = vmatprep.subr.mxu0 0.0
        %477 = vmatpush1.msra.mxu0 %v342
        %478 = vmatprep.subr.mxu0 0.0
        %479 = vmatpush1.msra.mxu0 %v343
        %480 = vmatprep.subr.mxu0 0.0
        %481 = vmatpush1.msra.mxu0 %v344
        %482 = vmatprep.subr.mxu0 0.0
        %483 = vmatpush1.msra.mxu0 %v345
        %484 = vmatprep.mubr.f32.mxu0 %v349
        %485 = vmatmul.mubr.f32.gmra.mrb[0].mxu0 %v348
        %v486 = vpop.f32.mrb[0].mxu0
        %v487 = vadd.f32 %v417, %v486
        %v488 = vpop.f32.mrb[0].mxu0
        %489 = vdwg.mxu0
        %p490 = scmp.eq.s32.totalorder %s26, 0
        // Predicated region
        $region53: #{tpu_custom_call.1} parent=39 // pred_check
          %p491 = pneg %p490
        $region54: #{tpu_custom_call.1} parent=39 // pred_check_branch
          %493 = sbr.rel (%p491) target = $region56
        $region55: #{tpu_custom_call.1} parent=39 // pred_region
          %494 = vst [vmem:[#allocation2] sm:$0xff] %v487
        $region56: #{tpu_custom_call.1} parent=39 // pred_fallthru
          _
        %p495 = scmp.gt.s32.totalorder %s26, 0
        // Predicated region
        $region57: #{tpu_custom_call.1} parent=39 // pred_check
          %p496 = pneg %p495
        $region58: #{tpu_custom_call.1} parent=39 // pred_check_branch
          %498 = sbr.rel (%p496) target = $region60
        $region59: #{tpu_custom_call.1} parent=39 // pred_region
          %v499 = vld [vmem:[#allocation2] sm:$0xff]
          %v500 = vadd.f32 %v499, %v487
          %501 = vst [vmem:[#allocation2] sm:$0xff] %v500
        $region60: #{tpu_custom_call.1} parent=39 // pred_fallthru
          _
        %p502 = scmp.eq.s32.totalorder %s26, 1
        // Predicated region
        $region61: #{tpu_custom_call.1} parent=39 // pred_check
          %p503 = pneg %p502
        $region62: #{tpu_custom_call.1} parent=39 // pred_check_branch
          %505 = sbr.rel (%p503) target = $region64
        $region63: #{tpu_custom_call.1} parent=39 // pred_region
          %v506 = vld [vmem:[#allocation2] sm:$0xff]
          %v507 = vld [vmem:[%s2] sm:$0x1]
          %v509 = vlaneseq
          %v510 = vshrl.u32 %v509, 7
          %v511 = vsub.s32 0, %v510
          %v512 = vrot.slane %v507, %v511
          %v514 = vadd.f32 %v506, %v512
          %v515 = vmax.f32 %v514, 0.0
          %v516 = vld [vmem:[#allocation8] sm:$0xff]
          %v517 = vld [vmem:[#allocation8 + $0x8] sm:$0xff]
          %v518 = vld [vmem:[#allocation8 + $0x10] sm:$0xff]
          %v519 = vld [vmem:[#allocation8 + $0x18] sm:$0xff]
          %v520 = vld [vmem:[#allocation8 + $0x20] sm:$0xff]
          %v521 = vld [vmem:[#allocation8 + $0x28] sm:$0xff]
          %v522 = vld [vmem:[#allocation8 + $0x30] sm:$0xff]
          %v523 = vld [vmem:[#allocation8 + $0x38] sm:$0xff]
          %v524 = vld [vmem:[#allocation8 + $0x40] sm:$0xff]
          %v525 = vld [vmem:[#allocation8 + $0x48] sm:$0xff]
          %v526 = vld [vmem:[#allocation8 + $0x50] sm:$0xff]
          %v527 = vld [vmem:[#allocation8 + $0x58] sm:$0xff]
          %v528 = vld [vmem:[#allocation8 + $0x60] sm:$0xff]
          %v529 = vld [vmem:[#allocation8 + $0x68] sm:$0xff]
          %v530 = vld [vmem:[#allocation8 + $0x70] sm:$0xff]
          %v531 = vld [vmem:[#allocation8 + $0x78] sm:$0xff]
          %v532 = vld [vmem:[%s4] sm:$0x1]
          %v534 = vlaneseq
          %v535 = vshrl.u32 %v534, 7
          %v536 = vsub.s32 0, %v535
          %v537 = vrot.slane %v532, %v536
          %539 = vmatprep.subr.mxu0 0.0
          %540 = vmatpush1.msra.mxu0 %v516
          %541 = vmatprep.subr.mxu0 0.0
          %542 = vmatpush1.msra.mxu0 %v517
          %543 = vmatprep.subr.mxu0 0.0
          %544 = vmatpush1.msra.mxu0 %v518
          %545 = vmatprep.subr.mxu0 0.0
          %546 = vmatpush1.msra.mxu0 %v519
          %547 = vmatprep.subr.mxu0 0.0
          %548 = vmatpush1.msra.mxu0 %v520
          %549 = vmatprep.subr.mxu0 0.0
          %550 = vmatpush1.msra.mxu0 %v521
          %551 = vmatprep.subr.mxu0 0.0
          %552 = vmatpush1.msra.mxu0 %v522
          %553 = vmatprep.subr.mxu0 0.0
          %554 = vmatpush1.msra.mxu0 %v523
          %555 = vmatprep.subr.mxu0 0.0
          %556 = vmatpush1.msra.mxu0 %v524
          %557 = vmatprep.subr.mxu0 0.0
          %558 = vmatpush1.msra.mxu0 %v525
          %559 = vmatprep.subr.mxu0 0.0
          %560 = vmatpush1.msra.mxu0 %v526
          %561 = vmatprep.subr.mxu0 0.0
          %562 = vmatpush1.msra.mxu0 %v527
          %563 = vmatprep.subr.mxu0 0.0
          %564 = vmatpush1.msra.mxu0 %v528
          %565 = vmatprep.subr.mxu0 0.0
          %566 = vmatpush1.msra.mxu0 %v529
          %567 = vmatprep.subr.mxu0 0.0
          %568 = vmatpush1.msra.mxu0 %v530
          %569 = vmatprep.subr.mxu0 0.0
          %570 = vmatpush1.msra.mxu0 %v531
          %571 = vmatprep.subr.mxu0 0.0
          %572 = vmatpush1.msra.mxu0 0.0
          %573 = vmatprep.subr.mxu0 0.0
          %574 = vmatpush1.msra.mxu0 0.0
          %575 = vmatprep.subr.mxu0 0.0
          %576 = vmatpush1.msra.mxu0 0.0
          %577 = vmatprep.subr.mxu0 0.0
          %578 = vmatpush1.msra.mxu0 0.0
          %579 = vmatprep.subr.mxu0 0.0
          %580 = vmatpush1.msra.mxu0 0.0
          %581 = vmatprep.subr.mxu0 0.0
          %582 = vmatpush1.msra.mxu0 0.0
          %583 = vmatprep.subr.mxu0 0.0
          %584 = vmatpush1.msra.mxu0 0.0
          %585 = vmatprep.subr.mxu0 0.0
          %586 = vmatpush1.msra.mxu0 0.0
          %587 = vmatprep.subr.mxu0 0.0
          %588 = vmatpush1.msra.mxu0 0.0
          %589 = vmatprep.subr.mxu0 0.0
          %590 = vmatpush1.msra.mxu0 0.0
          %591 = vmatprep.subr.mxu0 0.0
          %592 = vmatpush1.msra.mxu0 0.0
          %593 = vmatprep.subr.mxu0 0.0
          %594 = vmatpush1.msra.mxu0 0.0
          %595 = vmatprep.subr.mxu0 0.0
          %596 = vmatpush1.msra.mxu0 0.0
          %597 = vmatprep.subr.mxu0 0.0
          %598 = vmatpush1.msra.mxu0 0.0
          %599 = vmatprep.subr.mxu0 0.0
          %600 = vmatpush1.msra.mxu0 0.0
          %601 = vmatprep.subr.mxu0 0.0
          %602 = vmatpush1.msra.mxu0 0.0
          %603 = vmatprep.mubr.f32.mxu0 0.0
          %604 = vmatmul.mubr.f32.gmra.mrb[0].mxu0 %v515
          %v605 = vpop.f32.mrb[0].mxu0
          %v606 = vadd.f32 %v537, %v605
          %v607 = vpop.f32.mrb[0].mxu0
          %608 = vdwg.mxu0
          %609 = vst [vmem:[#allocation9] sm:$0xff] %v606
        $region64: #{tpu_custom_call.1} parent=39 // pred_fallthru
          _
        // Predicated region
        $region65: #{tpu_custom_call.1} parent=39 // pred_check
          %p610 = pneg %p163
        $region66: #{tpu_custom_call.1} parent=39 // pred_check_branch
          %612 = sbr.rel (%p610) target = $region68
        $region67: #{tpu_custom_call.1} parent=39 // pred_region
          %s614 = ssub.s32 128, 128
          %615 = vsyncadd [#allocation5], %s614
          %s616 = smul.addr %s25, 128
          %s617 = scalar_lea.hbm %s5, %s616
          %s619 = sshll.u32 [#allocation9], 4
          %s620 = int_to_ptr.vmem [resolvable:$true] %s619
          %622 = dma.vmem_to_hbm [thread:$0]  %s620, 128, %s617, [#allocation5]
        $region68: #{tpu_custom_call.1} parent=39 // pred_fallthru
          _
        // Predicated region
        $region69: #{tpu_custom_call.1} parent=39 // pred_check
          %p623 = pneg %p163
        $region70: #{tpu_custom_call.1} parent=39 // pred_check_branch
          %625 = sbr.rel (%p623) target = $region72
        $region71: #{tpu_custom_call.1} parent=39 // pred_region
          %626 = dma.done [#allocation5], 128
        $region72: #{tpu_custom_call.1} parent=39 // pred_fallthru
          _
      $region40: #{tpu_custom_call.1} parent=5 // pred_fallthru
        _
      %p627 = scmp.le.s32.totalorder 2, %s16
      // Predicated region
      $region73: #{tpu_custom_call.1} parent=5 // pred_check
        %p628 = pneg %p627
      $region74: #{tpu_custom_call.1} parent=5 // pred_check_branch
        %630 = sbr.rel (%p628) target = $region76
      $region75: #{tpu_custom_call.1} parent=5 // pred_region
        %s631 = ssub.s32 %s16, 2
      $region76: #{tpu_custom_call.1} parent=5 // pred_fallthru
        _
    $region6: #{tpu_custom_call.1} parent=1 // loop_footer
      %s20 = sadd.s32 1, %s16
    $region7: #{tpu_custom_call.1} parent=1 // loop_footer_branch
      %15 = sbr.rel target = $region3
    $region8: #{tpu_custom_call.1} parent=1 // loop_exit
      _
    %632 = vsyncpa [#allocation4], 1
    %s633 = scalar_lea.sflag [#allocation4], 1
    %634 = vsyncpa %s633, 1
    %635 = vsyncpa [#allocation7], 1
    %636 = vsyncpa [#allocation5], 1
    %s637 = scalar_lea.sflag [#allocation5], 1
    %638 = vsyncpa %s637, 1

</llo_original>
